<compile_context>
chip_gen: v7x
topology: tpu7x:2x2x1
jax: 0.10.0
libtpu: 0.0.40
codegen_flags: <defaults>
</compile_context>

<pallas_src>
import functools
import math

import jax
import jax.numpy as jnp
from jax.experimental import pallas as pl
from jax.experimental.pallas import tpu as pltpu


def _conv_mixer_kernel(p_ref, w_ref, b_ref, o_ref):
    # p_ref: (Mp, K)  bf16 im2col patches  (Mp = padded N*H*W, K = KH*KW*C)
    # w_ref: (K, C)   bf16 block-diagonal grouped-conv weight
    # b_ref: (1, C)   f32 bias
    # o_ref: (Mp, C)  output rows in compact (N*H*W, C) layout
    acc = jnp.dot(p_ref[...], w_ref[...], preferred_element_type=jnp.float32)
    o_ref[...] = (acc + b_ref[...]).astype(o_ref.dtype)


@functools.partial(jax.jit, static_argnames=("HW", "local_k", "num_heads"))
def conv_mixer_pallas(x, weight, bias, *, HW=(8, 25), local_k=(3, 3),
                      num_heads=8):
    """ConvMixer forward: x (N, H*W, C), weight (C, C//g, KH, KW), bias (C,)."""
    N, L, C = x.shape
    H, W = HW
    KH, KW = local_k
    assert L == H * W, (L, H, W)
    assert C % num_heads == 0, (C, num_heads)

    ph, pw = KH // 2, KW // 2
    num_taps = KH * KW
    M = N * H * W
    K = num_taps * C

    # ---- wrapper-side im2col: (M, K), tap-major then channel on the lane axis.
    x_nhwc = x.reshape(N, H, W, C)
    x_pad = jnp.pad(x_nhwc, ((0, 0), (ph, ph), (pw, pw), (0, 0)))
    taps = [x_pad[:, kh:kh + H, kw:kw + W, :]
            for kh in range(KH) for kw in range(KW)]
    patch = jnp.concatenate(taps, axis=-1).reshape(M, K)

    # Pad rows up to a sublane multiple (M=400 already is; kept for generality).
    Mp = -(-M // 8) * 8
    if Mp != M:
        patch = jnp.pad(patch, ((0, Mp - M), (0, 0)))

    # ---- block-diagonal (K, C) weight: row t*C + c_in matches the patch layout.
    g = num_heads
    cg = C // g
    w_g = weight.reshape(g, cg, cg, KH, KW)          # (group, co, ci, kh, kw)
    blocks = jnp.transpose(w_g, (3, 4, 0, 2, 1))     # (kh, kw, group, ci, co)
    eye_g = jnp.eye(g, dtype=weight.dtype)
    w_taps = jnp.einsum("hwgio,gk->hwgiko", blocks, eye_g)  # zero off-group
    w_mat = w_taps.reshape(K, C)
    # TODO(synk): if dim grows far past 128, replace the dense block-diagonal
    # weight with per-group matmuls to avoid zero-FLOP blow-up on the MXU.

    # bf16 operands into the MXU, f32 accumulation inside the kernel.
    patch_bf16 = patch.astype(jnp.bfloat16)
    w_bf16 = w_mat.astype(jnp.bfloat16)
    b2d = bias.reshape(1, C).astype(jnp.float32)

    out = pl.pallas_call(
        _conv_mixer_kernel,
        out_shape=jax.ShapeDtypeStruct((Mp, C), x.dtype),
        grid_spec=pltpu.PrefetchScalarGridSpec(
            num_scalar_prefetch=0,
            grid=(1,),
            in_specs=[
                pl.BlockSpec((Mp, K), lambda i: (0, 0)),
                pl.BlockSpec((K, C), lambda i: (0, 0)),
                pl.BlockSpec((1, C), lambda i: (0, 0)),
            ],
            out_specs=pl.BlockSpec((Mp, C), lambda i: (0, 0)),
        ),
        compiler_params=pltpu.CompilerParams(
            dimension_semantics=("arbitrary",)),
    )(patch_bf16, w_bf16, b2d)

    return out[:M].reshape(N, H * W, C)


def conv_mixer_ref(x, weight, bias, HW, local_k, num_heads):
    """Pure-JAX reference: exactly the PyTorch grouped-conv forward."""
    N, L, C = x.shape
    H, W = HW
    ph, pw = local_k[0] // 2, local_k[1] // 2
    xi = jnp.transpose(x, (0, 2, 1)).reshape(N, C, H, W)
    out = jax.lax.conv_general_dilated(
        xi, weight, window_strides=(1, 1),
        padding=((ph, ph), (pw, pw)),
        dimension_numbers=("NCHW", "OIHW", "NCHW"),
        feature_group_count=num_heads,
        precision=jax.lax.Precision.HIGHEST)
    out = out + bias.reshape(1, C, 1, 1)
    return jnp.transpose(out.reshape(N, C, H * W), (0, 2, 1))


if __name__ == "__main__":
    dim, num_heads = 32, 8
    HW, local_k = (8, 25), (3, 3)
    N = 2

    key = jax.random.PRNGKey(0)
    kx, kw, kb = jax.random.split(key, 3)
    x = jax.random.normal(kx, (N, HW[0] * HW[1], dim), dtype=jnp.float32)

    fan_in = (dim // num_heads) * local_k[0] * local_k[1]
    bound = 1.0 / math.sqrt(fan_in)
    weight = jax.random.uniform(
        kw, (dim, dim // num_heads, local_k[0], local_k[1]),
        dtype=jnp.float32, minval=-bound, maxval=bound)
    bias = jax.random.uniform(kb, (dim,), dtype=jnp.float32,
                              minval=-bound, maxval=bound)

    y = conv_mixer_pallas(x, weight, bias, HW=HW, local_k=local_k,
                          num_heads=num_heads)
    y = jax.block_until_ready(y)

    y_ref = conv_mixer_ref(x, weight, bias, HW, local_k, num_heads)
    assert y.shape == (N, HW[0] * HW[1], dim), y.shape
    assert y.dtype == x.dtype, y.dtype
    err = float(jnp.max(jnp.abs(y - y_ref)))
    assert err < 1e-2, f"max abs error vs grouped-conv reference: {err}"

    print("KERNEL_OK")
</pallas_src>

<mosaic_0001>
module attributes {stable_mosaic.version = 11 : i64} {
  func.func @_conv_mixer_kernel(%arg0: i32, %arg1: memref<400x288xbf16, #tpu.memory_space<vmem>>, %arg2: memref<288x32xbf16, #tpu.memory_space<vmem>>, %arg3: memref<1x32xf32, #tpu.memory_space<vmem>>, %arg4: memref<400x32xf32, #tpu.memory_space<vmem>>) attributes {dimension_semantics = [#tpu.dimension_semantics<arbitrary>], iteration_bounds = array<i64: 1>, scalar_prefetch = 0 : i64, scratch_operands = 0 : i64, tpu.core_type = #tpu.core_type<tc>, window_params = [{pipeline_mode = #tpu.pipeline_mode<synchronous>, transform_indices = @transform_0, window_bounds = array<i64: 400, 288>}, {pipeline_mode = #tpu.pipeline_mode<synchronous>, transform_indices = @transform_1, window_bounds = array<i64: 288, 32>}, {pipeline_mode = #tpu.pipeline_mode<synchronous>, transform_indices = @transform_2, window_bounds = array<i64: 1, 32>}, {pipeline_mode = #tpu.pipeline_mode<synchronous>, transform_indices = @transform_3, window_bounds = array<i64: 400, 32>}]} {
    %c0 = arith.constant 0 : index
    %c0_0 = arith.constant 0 : index
    %0 = vector.load %arg1[%c0, %c0_0] : memref<400x288xbf16, #tpu.memory_space<vmem>>, vector<400x288xbf16>
    %c0_1 = arith.constant 0 : index
    %c0_2 = arith.constant 0 : index
    %1 = vector.load %arg2[%c0_1, %c0_2] : memref<288x32xbf16, #tpu.memory_space<vmem>>, vector<288x32xbf16>
    %cst = arith.constant dense<0.000000e+00> : vector<400x32xf32>
    %2 = tpu.matmul %0, %1, %cst {dimension_numbers = #tpu.dot_dimension_numbers<[1], [0], [0], [1], [0, 0, 1, 1], [], []>} : vector<400x288xbf16>, vector<288x32xbf16>, vector<400x32xf32> -> vector<400x32xf32>
    %c0_3 = arith.constant 0 : index
    %c0_4 = arith.constant 0 : index
    %3 = vector.load %arg3[%c0_3, %c0_4] : memref<1x32xf32, #tpu.memory_space<vmem>>, vector<1x32xf32>
    %4 = vector.broadcast %3 : vector<1x32xf32> to vector<400x32xf32>
    %5 = arith.addf %2, %4 : vector<400x32xf32>
    %c0_5 = arith.constant 0 : index
    %c0_6 = arith.constant 0 : index
    %6 = vector.load %arg4[%c0_5, %c0_6] : memref<400x32xf32, #tpu.memory_space<vmem>>, vector<400x32xf32>
    tpu.vector_store %arg4[%c0_5, %c0_6], %5 {strides = array<i32>} : memref<400x32xf32, #tpu.memory_space<vmem>>, vector<400x32xf32>,
    return
  }
  func.func @transform_0(%arg0: i32) -> (i32, i32) {
    %c0_i32 = arith.constant 0 : i32
    %c0_i32_0 = arith.constant 0 : i32
    %c0_i32_1 = arith.constant 0 : i32
    return %c0_i32, %c0_i32_0 : i32, i32
  }
  func.func @transform_1(%arg0: i32) -> (i32, i32) {
    %c0_i32 = arith.constant 0 : i32
    %c0_i32_0 = arith.constant 0 : i32
    %c0_i32_1 = arith.constant 0 : i32
    return %c0_i32, %c0_i32_0 : i32, i32
  }
  func.func @transform_2(%arg0: i32) -> (i32, i32) {
    %c0_i32 = arith.constant 0 : i32
    %c0_i32_0 = arith.constant 0 : i32
    %c0_i32_1 = arith.constant 0 : i32
    return %c0_i32, %c0_i32_0 : i32, i32
  }
  func.func @transform_3(%arg0: i32) -> (i32, i32) {
    %c0_i32 = arith.constant 0 : i32
    %c0_i32_0 = arith.constant 0 : i32
    %c0_i32_1 = arith.constant 0 : i32
    return %c0_i32, %c0_i32_0 : i32, i32
  }
}

</mosaic_0001>

<llo_original>
// kernel: conv_mixer_pallas.1
$region0: #{conv_mixer_pallas.1}
  #allocation0 [shape = 'u32[]', space=smem, size = 0x4, offset = 0x4, fixed_abs, tag = 'smem constant byte address 0x4 - core index']
  #allocation1 [shape = 'u32[144,128]{1,0:T(1,128)}', space=vmem, size = 0x12000, scoped, tag = 'internal scratch']
  %s0 = inlined_call_operand.vmem [shape: bf16[400,288], index: 0, kind: input, shape index: {}]
  %s1 = inlined_call_operand.vmem [shape: bf16[288,32], index: 1, kind: input, shape index: {}]
  %s2 = inlined_call_operand.vmem [shape: f32[1,32], index: 2, kind: input, shape index: {}]
  %s3 = inlined_call_operand.vmem [shape: f32[400,32], index: 3, kind: output, shape index: {}]
  %s4 = sld [smem:[#allocation0]]
  $region22: #{conv_mixer_pallas.1} parent=0
    _
  %s6 = ssub.s32 1, %s4
  %s7 = scalar_select 0, %s6, %s4
  // Predicated region
  $region2: #{conv_mixer_pallas.1} parent=0 // pred_check
    _
  $region3: #{conv_mixer_pallas.1} parent=0 // pred_check_branch
    %9 = sbr.rel (0) target = $region5
  $region4: #{conv_mixer_pallas.1} parent=0 // pred_region
    _
  $region5: #{conv_mixer_pallas.1} parent=0 // pred_fallthru
    _
  // Predicated region
  $region6: #{conv_mixer_pallas.1} parent=0 // pred_check
    _
  $region7: #{conv_mixer_pallas.1} parent=0 // pred_check_branch
    %11 = sbr.rel (0) target = $region9
  $region8: #{conv_mixer_pallas.1} parent=0 // pred_region
    _
  $region9: #{conv_mixer_pallas.1} parent=0 // pred_fallthru
    _
  // Predicated region
  $region10: #{conv_mixer_pallas.1} parent=0 // pred_check
    _
  $region11: #{conv_mixer_pallas.1} parent=0 // pred_check_branch
    %13 = sbr.rel (0) target = $region13
  $region12: #{conv_mixer_pallas.1} parent=0 // pred_region
    _
  $region13: #{conv_mixer_pallas.1} parent=0 // pred_fallthru
    _
  %v15 = vld [vmem:[%s0] sm:$0xff]
  %v16 = vld [vmem:[%s0 + $0x8] sm:$0xf]
  %v17 = vld [vmem:[%s0 + $0xc] sm:$0xff]
  %v18 = vld [vmem:[%s0 + $0x14] sm:$0xf]
  %v19 = vld [vmem:[%s0 + $0x18] sm:$0xff]
  %v20 = vld [vmem:[%s0 + $0x20] sm:$0xf]
  %v21 = vld [vmem:[%s0 + $0x24] sm:$0xff]
  %v22 = vld [vmem:[%s0 + $0x2c] sm:$0xf]
  %v23 = vld [vmem:[%s0 + $0x30] sm:$0xff]
  %v24 = vld [vmem:[%s0 + $0x38] sm:$0xf]
  %v25 = vld [vmem:[%s0 + $0x3c] sm:$0xff]
  %v26 = vld [vmem:[%s0 + $0x44] sm:$0xf]
  %v27 = vld [vmem:[%s0 + $0x48] sm:$0xff]
  %v28 = vld [vmem:[%s0 + $0x50] sm:$0xf]
  %v29 = vld [vmem:[%s0 + $0x54] sm:$0xff]
  %v30 = vld [vmem:[%s0 + $0x5c] sm:$0xf]
  %v31 = vld [vmem:[%s0 + $0x60] sm:$0xff]
  %v32 = vld [vmem:[%s0 + $0x68] sm:$0xf]
  %v33 = vld [vmem:[%s0 + $0x6c] sm:$0xff]
  %v34 = vld [vmem:[%s0 + $0x74] sm:$0xf]
  %v35 = vld [vmem:[%s0 + $0x78] sm:$0xff]
  %v36 = vld [vmem:[%s0 + $0x80] sm:$0xf]
  %v37 = vld [vmem:[%s0 + $0x84] sm:$0xff]
  %v38 = vld [vmem:[%s0 + $0x8c] sm:$0xf]
  %v39 = vld [vmem:[%s0 + $0x90] sm:$0xff]
  %v40 = vld [vmem:[%s0 + $0x98] sm:$0xf]
  %v41 = vld [vmem:[%s0 + $0x9c] sm:$0xff]
  %v42 = vld [vmem:[%s0 + $0xa4] sm:$0xf]
  %v43 = vld [vmem:[%s0 + $0xa8] sm:$0xff]
  %v44 = vld [vmem:[%s0 + $0xb0] sm:$0xf]
  %v45 = vld [vmem:[%s0 + $0xb4] sm:$0xff]
  %v46 = vld [vmem:[%s0 + $0xbc] sm:$0xf]
  %v47 = vld [vmem:[%s0 + $0xc0] sm:$0xff]
  %v48 = vld [vmem:[%s0 + $0xc8] sm:$0xf]
  %v49 = vld [vmem:[%s0 + $0xcc] sm:$0xff]
  %v50 = vld [vmem:[%s0 + $0xd4] sm:$0xf]
  %v51 = vld [vmem:[%s0 + $0xd8] sm:$0xff]
  %v52 = vld [vmem:[%s0 + $0xe0] sm:$0xf]
  %v53 = vld [vmem:[%s0 + $0xe4] sm:$0xff]
  %v54 = vld [vmem:[%s0 + $0xec] sm:$0xf]
  %v55 = vld [vmem:[%s0 + $0xf0] sm:$0xff]
  %v56 = vld [vmem:[%s0 + $0xf8] sm:$0xf]
  %v57 = vld [vmem:[%s0 + $0xfc] sm:$0xff]
  %v58 = vld [vmem:[%s0 + $0x104] sm:$0xf]
  %v59 = vld [vmem:[%s0 + $0x108] sm:$0xff]
  %v60 = vld [vmem:[%s0 + $0x110] sm:$0xf]
  %v61 = vld [vmem:[%s0 + $0x114] sm:$0xff]
  %v62 = vld [vmem:[%s0 + $0x11c] sm:$0xf]
  %v63 = vld [vmem:[%s0 + $0x120] sm:$0xff]
  %v64 = vld [vmem:[%s0 + $0x128] sm:$0xf]
  %v65 = vld [vmem:[%s0 + $0x12c] sm:$0xff]
  %v66 = vld [vmem:[%s0 + $0x134] sm:$0xf]
  %v67 = vld [vmem:[%s0 + $0x138] sm:$0xff]
  %v68 = vld [vmem:[%s0 + $0x140] sm:$0xf]
  %v69 = vld [vmem:[%s0 + $0x144] sm:$0xff]
  %v70 = vld [vmem:[%s0 + $0x14c] sm:$0xf]
  %v71 = vld [vmem:[%s0 + $0x150] sm:$0xff]
  %v72 = vld [vmem:[%s0 + $0x158] sm:$0xf]
  %v73 = vld [vmem:[%s0 + $0x15c] sm:$0xff]
  %v74 = vld [vmem:[%s0 + $0x164] sm:$0xf]
  %v75 = vld [vmem:[%s0 + $0x168] sm:$0xff]
  %v76 = vld [vmem:[%s0 + $0x170] sm:$0xf]
  %v77 = vld [vmem:[%s0 + $0x174] sm:$0xff]
  %v78 = vld [vmem:[%s0 + $0x17c] sm:$0xf]
  %v79 = vld [vmem:[%s0 + $0x180] sm:$0xff]
  %v80 = vld [vmem:[%s0 + $0x188] sm:$0xf]
  %v81 = vld [vmem:[%s0 + $0x18c] sm:$0xff]
  %v82 = vld [vmem:[%s0 + $0x194] sm:$0xf]
  %v83 = vld [vmem:[%s0 + $0x198] sm:$0xff]
  %v84 = vld [vmem:[%s0 + $0x1a0] sm:$0xf]
  %v85 = vld [vmem:[%s0 + $0x1a4] sm:$0xff]
  %v86 = vld [vmem:[%s0 + $0x1ac] sm:$0xf]
  %v87 = vld [vmem:[%s0 + $0x1b0] sm:$0xff]
  %v88 = vld [vmem:[%s0 + $0x1b8] sm:$0xf]
  %v89 = vld [vmem:[%s0 + $0x1bc] sm:$0xff]
  %v90 = vld [vmem:[%s0 + $0x1c4] sm:$0xf]
  %v91 = vld [vmem:[%s0 + $0x1c8] sm:$0xff]
  %v92 = vld [vmem:[%s0 + $0x1d0] sm:$0xf]
  %v93 = vld [vmem:[%s0 + $0x1d4] sm:$0xff]
  %v94 = vld [vmem:[%s0 + $0x1dc] sm:$0xf]
  %v95 = vld [vmem:[%s0 + $0x1e0] sm:$0xff]
  %v96 = vld [vmem:[%s0 + $0x1e8] sm:$0xf]
  %v97 = vld [vmem:[%s0 + $0x1ec] sm:$0xff]
  %v98 = vld [vmem:[%s0 + $0x1f4] sm:$0xf]
  %v99 = vld [vmem:[%s0 + $0x1f8] sm:$0xff]
  %v100 = vld [vmem:[%s0 + $0x200] sm:$0xf]
  %v101 = vld [vmem:[%s0 + $0x204] sm:$0xff]
  %v102 = vld [vmem:[%s0 + $0x20c] sm:$0xf]
  %v103 = vld [vmem:[%s0 + $0x210] sm:$0xff]
  %v104 = vld [vmem:[%s0 + $0x218] sm:$0xf]
  %v105 = vld [vmem:[%s0 + $0x21c] sm:$0xff]
  %v106 = vld [vmem:[%s0 + $0x224] sm:$0xf]
  %v107 = vld [vmem:[%s0 + $0x228] sm:$0xff]
  %v108 = vld [vmem:[%s0 + $0x230] sm:$0xf]
  %v109 = vld [vmem:[%s0 + $0x234] sm:$0xff]
  %v110 = vld [vmem:[%s0 + $0x23c] sm:$0xf]
  %v111 = vld [vmem:[%s0 + $0x240] sm:$0xff]
  %v112 = vld [vmem:[%s0 + $0x248] sm:$0xf]
  %v113 = vld [vmem:[%s0 + $0x24c] sm:$0xff]
  %v114 = vld [vmem:[%s0 + $0x254] sm:$0xf]
  %v115 = vld [vmem:[%s1] sm:$0xf]
  %v116 = vld [vmem:[%s1 + $0x4] sm:$0xf]
  %v117 = vld [vmem:[%s1 + $0x8] sm:$0xf]
  %v118 = vld [vmem:[%s1 + $0xc] sm:$0xf]
  %v119 = vld [vmem:[%s1 + $0x10] sm:$0xf]
  %v120 = vld [vmem:[%s1 + $0x14] sm:$0xf]
  %v121 = vld [vmem:[%s1 + $0x18] sm:$0xf]
  %v122 = vld [vmem:[%s1 + $0x1c] sm:$0xf]
  %v123 = vld [vmem:[%s1 + $0x20] sm:$0xf]
  %v124 = vld [vmem:[%s1 + $0x24] sm:$0xf]
  %v125 = vld [vmem:[%s1 + $0x28] sm:$0xf]
  %v126 = vld [vmem:[%s1 + $0x2c] sm:$0xf]
  %v127 = vld [vmem:[%s1 + $0x30] sm:$0xf]
  %v128 = vld [vmem:[%s1 + $0x34] sm:$0xf]
  %v129 = vld [vmem:[%s1 + $0x38] sm:$0xf]
  %v130 = vld [vmem:[%s1 + $0x3c] sm:$0xf]
  %v131 = vld [vmem:[%s1 + $0x40] sm:$0xf]
  %v132 = vld [vmem:[%s1 + $0x44] sm:$0xf]
  %v133 = vld [vmem:[%s1 + $0x48] sm:$0xf]
  %v134 = vld [vmem:[%s1 + $0x4c] sm:$0xf]
  %v135 = vld [vmem:[%s1 + $0x50] sm:$0xf]
  %v136 = vld [vmem:[%s1 + $0x54] sm:$0xf]
  %v137 = vld [vmem:[%s1 + $0x58] sm:$0xf]
  %v138 = vld [vmem:[%s1 + $0x5c] sm:$0xf]
  %v139 = vld [vmem:[%s1 + $0x60] sm:$0xf]
  %v140 = vld [vmem:[%s1 + $0x64] sm:$0xf]
  %v141 = vld [vmem:[%s1 + $0x68] sm:$0xf]
  %v142 = vld [vmem:[%s1 + $0x6c] sm:$0xf]
  %v143 = vld [vmem:[%s1 + $0x70] sm:$0xf]
  %v144 = vld [vmem:[%s1 + $0x74] sm:$0xf]
  %v145 = vld [vmem:[%s1 + $0x78] sm:$0xf]
  %v146 = vld [vmem:[%s1 + $0x7c] sm:$0xf]
  %v147 = vld [vmem:[%s1 + $0x80] sm:$0xf]
  %v148 = vld [vmem:[%s1 + $0x84] sm:$0xf]
  %v149 = vld [vmem:[%s1 + $0x88] sm:$0xf]
  %v150 = vld [vmem:[%s1 + $0x8c] sm:$0xf]
  %v151 = vld [vmem:[%s2] sm:$0x1]
  %v153 = vlaneseq
  %v154 = vshrl.u32 %v153, 7
  %v155 = vsub.s32 0, %v154
  %v156 = vrot.slane %v151, %v155
  %v258 = vunpack.c.l.b16 %v15
  %v259 = vunpack.c.h.b16 %v15
  %v260 = vunpack.c.l.b16 %v16
  %v261 = vunpack.c.l.b16 %v17
  %v262 = vunpack.c.h.b16 %v17
  %v263 = vunpack.c.l.b16 %v18
  %v264 = vunpack.c.l.b16 %v19
  %v265 = vunpack.c.h.b16 %v19
  %v266 = vunpack.c.l.b16 %v20
  %v267 = vunpack.c.l.b16 %v21
  %v268 = vunpack.c.h.b16 %v21
  %v269 = vunpack.c.l.b16 %v22
  %v270 = vunpack.c.l.b16 %v23
  %v271 = vunpack.c.h.b16 %v23
  %v272 = vunpack.c.l.b16 %v24
  %v273 = vunpack.c.l.b16 %v25
  %v274 = vunpack.c.h.b16 %v25
  %v275 = vunpack.c.l.b16 %v26
  %v276 = vunpack.c.l.b16 %v27
  %v277 = vunpack.c.h.b16 %v27
  %v278 = vunpack.c.l.b16 %v28
  %v279 = vunpack.c.l.b16 %v29
  %v280 = vunpack.c.h.b16 %v29
  %v281 = vunpack.c.l.b16 %v30
  %v282 = vunpack.c.l.b16 %v31
  %v283 = vunpack.c.h.b16 %v31
  %v284 = vunpack.c.l.b16 %v32
  %v285 = vunpack.c.l.b16 %v33
  %v286 = vunpack.c.h.b16 %v33
  %v287 = vunpack.c.l.b16 %v34
  %v288 = vunpack.c.l.b16 %v35
  %v289 = vunpack.c.h.b16 %v35
  %v290 = vunpack.c.l.b16 %v36
  %v291 = vunpack.c.l.b16 %v37
  %v292 = vunpack.c.h.b16 %v37
  %v293 = vunpack.c.l.b16 %v38
  %v294 = vunpack.c.l.b16 %v39
  %v295 = vunpack.c.h.b16 %v39
  %v296 = vunpack.c.l.b16 %v40
  %v297 = vunpack.c.l.b16 %v41
  %v298 = vunpack.c.h.b16 %v41
  %v299 = vunpack.c.l.b16 %v42
  %v300 = vunpack.c.l.b16 %v43
  %v301 = vunpack.c.h.b16 %v43
  %v302 = vunpack.c.l.b16 %v44
  %v303 = vunpack.c.l.b16 %v45
  %v304 = vunpack.c.h.b16 %v45
  %v305 = vunpack.c.l.b16 %v46
  %v306 = vunpack.c.l.b16 %v47
  %v307 = vunpack.c.h.b16 %v47
  %v308 = vunpack.c.l.b16 %v48
  %v309 = vunpack.c.l.b16 %v49
  %v310 = vunpack.c.h.b16 %v49
  %v311 = vunpack.c.l.b16 %v50
  %v312 = vunpack.c.l.b16 %v51
  %v313 = vunpack.c.h.b16 %v51
  %v314 = vunpack.c.l.b16 %v52
  %v315 = vunpack.c.l.b16 %v53
  %v316 = vunpack.c.h.b16 %v53
  %v317 = vunpack.c.l.b16 %v54
  %v318 = vunpack.c.l.b16 %v55
  %v319 = vunpack.c.h.b16 %v55
  %v320 = vunpack.c.l.b16 %v56
  %v321 = vunpack.c.l.b16 %v57
  %v322 = vunpack.c.h.b16 %v57
  %v323 = vunpack.c.l.b16 %v58
  %v324 = vunpack.c.l.b16 %v59
  %v325 = vunpack.c.h.b16 %v59
  %v326 = vunpack.c.l.b16 %v60
  %v327 = vunpack.c.l.b16 %v61
  %v328 = vunpack.c.h.b16 %v61
  %v329 = vunpack.c.l.b16 %v62
  %v330 = vunpack.c.l.b16 %v63
  %v331 = vunpack.c.h.b16 %v63
  %v332 = vunpack.c.l.b16 %v64
  %v333 = vunpack.c.l.b16 %v65
  %v334 = vunpack.c.h.b16 %v65
  %v335 = vunpack.c.l.b16 %v66
  %v336 = vunpack.c.l.b16 %v67
  %v337 = vunpack.c.h.b16 %v67
  %v338 = vunpack.c.l.b16 %v68
  %v339 = vunpack.c.l.b16 %v69
  %v340 = vunpack.c.h.b16 %v69
  %v341 = vunpack.c.l.b16 %v70
  %v342 = vunpack.c.l.b16 %v71
  %v343 = vunpack.c.h.b16 %v71
  %v344 = vunpack.c.l.b16 %v72
  %v345 = vunpack.c.l.b16 %v73
  %v346 = vunpack.c.h.b16 %v73
  %v347 = vunpack.c.l.b16 %v74
  %v348 = vunpack.c.l.b16 %v75
  %v349 = vunpack.c.h.b16 %v75
  %v350 = vunpack.c.l.b16 %v76
  %v351 = vunpack.c.l.b16 %v77
  %v352 = vunpack.c.h.b16 %v77
  %v353 = vunpack.c.l.b16 %v78
  %v354 = vunpack.c.l.b16 %v79
  %v355 = vunpack.c.h.b16 %v79
  %v356 = vunpack.c.l.b16 %v80
  %v357 = vunpack.c.l.b16 %v81
  %v358 = vunpack.c.h.b16 %v81
  %v359 = vunpack.c.l.b16 %v82
  %v360 = vunpack.c.l.b16 %v83
  %v361 = vunpack.c.h.b16 %v83
  %v362 = vunpack.c.l.b16 %v84
  %v363 = vunpack.c.l.b16 %v85
  %v364 = vunpack.c.h.b16 %v85
  %v365 = vunpack.c.l.b16 %v86
  %v366 = vunpack.c.l.b16 %v87
  %v367 = vunpack.c.h.b16 %v87
  %v368 = vunpack.c.l.b16 %v88
  %v369 = vunpack.c.l.b16 %v89
  %v370 = vunpack.c.h.b16 %v89
  %v371 = vunpack.c.l.b16 %v90
  %v372 = vunpack.c.l.b16 %v91
  %v373 = vunpack.c.h.b16 %v91
  %v374 = vunpack.c.l.b16 %v92
  %v375 = vunpack.c.l.b16 %v93
  %v376 = vunpack.c.h.b16 %v93
  %v377 = vunpack.c.l.b16 %v94
  %v378 = vunpack.c.l.b16 %v95
  %v379 = vunpack.c.h.b16 %v95
  %v380 = vunpack.c.l.b16 %v96
  %v381 = vunpack.c.l.b16 %v97
  %v382 = vunpack.c.h.b16 %v97
  %v383 = vunpack.c.l.b16 %v98
  %v384 = vunpack.c.l.b16 %v99
  %v385 = vunpack.c.h.b16 %v99
  %v386 = vunpack.c.l.b16 %v100
  %v387 = vunpack.c.l.b16 %v101
  %v388 = vunpack.c.h.b16 %v101
  %v389 = vunpack.c.l.b16 %v102
  %v390 = vunpack.c.l.b16 %v103
  %v391 = vunpack.c.h.b16 %v103
  %v392 = vunpack.c.l.b16 %v104
  %v393 = vunpack.c.l.b16 %v105
  %v394 = vunpack.c.h.b16 %v105
  %v395 = vunpack.c.l.b16 %v106
  %v396 = vunpack.c.l.b16 %v107
  %v397 = vunpack.c.h.b16 %v107
  %v398 = vunpack.c.l.b16 %v108
  %v399 = vunpack.c.l.b16 %v109
  %v400 = vunpack.c.h.b16 %v109
  %v401 = vunpack.c.l.b16 %v110
  %v402 = vunpack.c.l.b16 %v111
  %v403 = vunpack.c.h.b16 %v111
  %v404 = vunpack.c.l.b16 %v112
  %v405 = vunpack.c.l.b16 %v113
  %v406 = vunpack.c.h.b16 %v113
  %v407 = vunpack.c.l.b16 %v114
  %v408 = vpack.c.b16 %v261, %v258
  %v409 = vpack.c.b16 %v262, %v259
  %v410 = vpack.c.b16 %v263, %v260
  %v411 = vpack.c.b16 %v267, %v264
  %v412 = vpack.c.b16 %v268, %v265
  %v413 = vpack.c.b16 %v269, %v266
  %v414 = vpack.c.b16 %v273, %v270
  %v415 = vpack.c.b16 %v274, %v271
  %v416 = vpack.c.b16 %v275, %v272
  %v417 = vpack.c.b16 %v279, %v276
  %v418 = vpack.c.b16 %v280, %v277
  %v419 = vpack.c.b16 %v281, %v278
  %v420 = vpack.c.b16 %v285, %v282
  %v421 = vpack.c.b16 %v286, %v283
  %v422 = vpack.c.b16 %v287, %v284
  %v423 = vpack.c.b16 %v291, %v288
  %v424 = vpack.c.b16 %v292, %v289
  %v425 = vpack.c.b16 %v293, %v290
  %v426 = vpack.c.b16 %v297, %v294
  %v427 = vpack.c.b16 %v298, %v295
  %v428 = vpack.c.b16 %v299, %v296
  %v429 = vpack.c.b16 %v303, %v300
  %v430 = vpack.c.b16 %v304, %v301
  %v431 = vpack.c.b16 %v305, %v302
  %v432 = vpack.c.b16 %v309, %v306
  %v433 = vpack.c.b16 %v310, %v307
  %v434 = vpack.c.b16 %v311, %v308
  %v435 = vpack.c.b16 %v315, %v312
  %v436 = vpack.c.b16 %v316, %v313
  %v437 = vpack.c.b16 %v317, %v314
  %v438 = vpack.c.b16 %v321, %v318
  %v439 = vpack.c.b16 %v322, %v319
  %v440 = vpack.c.b16 %v323, %v320
  %v441 = vpack.c.b16 %v327, %v324
  %v442 = vpack.c.b16 %v328, %v325
  %v443 = vpack.c.b16 %v329, %v326
  %v444 = vpack.c.b16 %v333, %v330
  %v445 = vpack.c.b16 %v334, %v331
  %v446 = vpack.c.b16 %v335, %v332
  %v447 = vpack.c.b16 %v339, %v336
  %v448 = vpack.c.b16 %v340, %v337
  %v449 = vpack.c.b16 %v341, %v338
  %v450 = vpack.c.b16 %v345, %v342
  %v451 = vpack.c.b16 %v346, %v343
  %v452 = vpack.c.b16 %v347, %v344
  %v453 = vpack.c.b16 %v351, %v348
  %v454 = vpack.c.b16 %v352, %v349
  %v455 = vpack.c.b16 %v353, %v350
  %v456 = vpack.c.b16 %v357, %v354
  %v457 = vpack.c.b16 %v358, %v355
  %v458 = vpack.c.b16 %v359, %v356
  %v459 = vpack.c.b16 %v363, %v360
  %v460 = vpack.c.b16 %v364, %v361
  %v461 = vpack.c.b16 %v365, %v362
  %v462 = vpack.c.b16 %v369, %v366
  %v463 = vpack.c.b16 %v370, %v367
  %v464 = vpack.c.b16 %v371, %v368
  %v465 = vpack.c.b16 %v375, %v372
  %v466 = vpack.c.b16 %v376, %v373
  %v467 = vpack.c.b16 %v377, %v374
  %v468 = vpack.c.b16 %v381, %v378
  %v469 = vpack.c.b16 %v382, %v379
  %v470 = vpack.c.b16 %v383, %v380
  %v471 = vpack.c.b16 %v387, %v384
  %v472 = vpack.c.b16 %v388, %v385
  %v473 = vpack.c.b16 %v389, %v386
  %v474 = vpack.c.b16 %v393, %v390
  %v475 = vpack.c.b16 %v394, %v391
  %v476 = vpack.c.b16 %v395, %v392
  %v477 = vpack.c.b16 %v399, %v396
  %v478 = vpack.c.b16 %v400, %v397
  %v479 = vpack.c.b16 %v401, %v398
  %v480 = vpack.c.b16 %v405, %v402
  %v481 = vpack.c.b16 %v406, %v403
  %v482 = vpack.c.b16 %v407, %v404
  %v569 = vunpack.c.l.b16 %v115
  %v570 = vunpack.c.l.b16 %v116
  %v571 = vunpack.c.l.b16 %v117
  %v572 = vunpack.c.l.b16 %v118
  %v573 = vunpack.c.l.b16 %v119
  %v574 = vunpack.c.l.b16 %v120
  %v575 = vunpack.c.l.b16 %v121
  %v576 = vunpack.c.l.b16 %v122
  %v577 = vunpack.c.l.b16 %v123
  %v578 = vunpack.c.l.b16 %v124
  %v579 = vunpack.c.l.b16 %v125
  %v580 = vunpack.c.l.b16 %v126
  %v581 = vunpack.c.l.b16 %v127
  %v582 = vunpack.c.l.b16 %v128
  %v583 = vunpack.c.l.b16 %v129
  %v584 = vunpack.c.l.b16 %v130
  %v585 = vunpack.c.l.b16 %v131
  %v586 = vunpack.c.l.b16 %v132
  %v587 = vunpack.c.l.b16 %v133
  %v588 = vunpack.c.l.b16 %v134
  %v589 = vunpack.c.l.b16 %v135
  %v590 = vunpack.c.l.b16 %v136
  %v591 = vunpack.c.l.b16 %v137
  %v592 = vunpack.c.l.b16 %v138
  %v593 = vunpack.c.l.b16 %v139
  %v594 = vunpack.c.l.b16 %v140
  %v595 = vunpack.c.l.b16 %v141
  %v596 = vunpack.c.l.b16 %v142
  %v597 = vunpack.c.l.b16 %v143
  %v598 = vunpack.c.l.b16 %v144
  %v599 = vunpack.c.l.b16 %v145
  %v600 = vunpack.c.l.b16 %v146
  %v601 = vunpack.c.l.b16 %v147
  %v602 = vunpack.c.l.b16 %v148
  %v603 = vunpack.c.l.b16 %v149
  %v604 = vunpack.c.l.b16 %v150
  %v605 = vpack.c.b16 %v570, %v569
  %v606 = vpack.c.b16 %v572, %v571
  %v607 = vpack.c.b16 %v574, %v573
  %v608 = vpack.c.b16 %v576, %v575
  %v609 = vpack.c.b16 %v578, %v577
  %v610 = vpack.c.b16 %v580, %v579
  %v611 = vpack.c.b16 %v582, %v581
  %v612 = vpack.c.b16 %v584, %v583
  %v613 = vpack.c.b16 %v586, %v585
  %v614 = vpack.c.b16 %v588, %v587
  %v615 = vpack.c.b16 %v590, %v589
  %v616 = vpack.c.b16 %v592, %v591
  %v617 = vpack.c.b16 %v594, %v593
  %v618 = vpack.c.b16 %v596, %v595
  %v619 = vpack.c.b16 %v598, %v597
  %v620 = vpack.c.b16 %v600, %v599
  %v621 = vpack.c.b16 %v602, %v601
  %v622 = vpack.c.b16 %v604, %v603
  %vm641 = vcmask 261120
  %v643 = vsel %vm641, %v410, 0
  %v646 = vsel %vm641, %v413, 0
  %v649 = vsel %vm641, %v416, 0
  %v652 = vsel %vm641, %v419, 0
  %v655 = vsel %vm641, %v422, 0
  %v658 = vsel %vm641, %v425, 0
  %v661 = vsel %vm641, %v428, 0
  %v664 = vsel %vm641, %v431, 0
  %v667 = vsel %vm641, %v434, 0
  %v670 = vsel %vm641, %v437, 0
  %v673 = vsel %vm641, %v440, 0
  %v676 = vsel %vm641, %v443, 0
  %v679 = vsel %vm641, %v446, 0
  %v682 = vsel %vm641, %v449, 0
  %v685 = vsel %vm641, %v452, 0
  %v688 = vsel %vm641, %v455, 0
  %v691 = vsel %vm641, %v458, 0
  %v694 = vsel %vm641, %v461, 0
  %v697 = vsel %vm641, %v464, 0
  %v700 = vsel %vm641, %v467, 0
  %v703 = vsel %vm641, %v470, 0
  %v706 = vsel %vm641, %v473, 0
  %v709 = vsel %vm641, %v476, 0
  %v712 = vsel %vm641, %v479, 0
  %v715 = vsel %vm641, %v482, 0
  %717 = vmatprep.subr.bf16.mxu0 0
  %718 = vmatpush1.bf16.msra.mxu0 %v605
  %719 = vmatprep.subr.bf16.mxu0 0
  %720 = vmatpush1.bf16.msra.mxu0 %v606
  %721 = vmatprep.subr.bf16.mxu0 0
  %722 = vmatpush1.bf16.msra.mxu0 %v607
  %723 = vmatprep.subr.bf16.mxu0 0
  %724 = vmatpush1.bf16.msra.mxu0 %v608
  %725 = vmatprep.subr.bf16.mxu0 0
  %726 = vmatpush1.bf16.msra.mxu0 %v609
  %727 = vmatprep.subr.bf16.mxu0 0
  %728 = vmatpush1.bf16.msra.mxu0 %v610
  %729 = vmatprep.subr.bf16.mxu0 0
  %730 = vmatpush1.bf16.msra.mxu0 %v611
  %731 = vmatprep.subr.bf16.mxu0 0
  %732 = vmatpush1.bf16.msra.mxu0 %v612
  %733 = vmatprep.subr.bf16.mxu0 0
  %734 = vmatpush1.bf16.msra.mxu0 %v613
  %735 = vmatprep.subr.bf16.mxu0 0
  %736 = vmatpush1.bf16.msra.mxu0 %v614
  %737 = vmatprep.subr.bf16.mxu0 0
  %738 = vmatpush1.bf16.msra.mxu0 %v615
  %739 = vmatprep.subr.bf16.mxu0 0
  %740 = vmatpush1.bf16.msra.mxu0 %v616
  %741 = vmatprep.subr.bf16.mxu0 0
  %742 = vmatpush1.bf16.msra.mxu0 %v617
  %743 = vmatprep.subr.bf16.mxu0 0
  %744 = vmatpush1.bf16.msra.mxu0 %v618
  %745 = vmatprep.subr.bf16.mxu0 0
  %746 = vmatpush1.bf16.msra.mxu0 %v619
  %747 = vmatprep.subr.bf16.mxu0 0
  %748 = vmatpush1.bf16.msra.mxu0 %v620
  %749 = vmatprep.mubr.bf16.mxu0 %v409
  %750 = vmatmul.mubr.bf16.gmra.mrb[0].mxu0 %v408
  %v751 = vpop.f32.mrb[0].mxu0
  %v752 = vadd.f32 %v156, %v751
  %v753 = vpop.f32.mrb[0].mxu0
  %v754 = vpop.f32.mrb[0].mxu0
  %v755 = vadd.f32 %v156, %v754
  %v756 = vpop.f32.mrb[0].mxu0
  %757 = vmatprep.mubr.bf16.mxu0 %v412
  %758 = vmatmul.mubr.bf16.gmra.mrb[0].mxu0 %v411
  %v759 = vpop.f32.mrb[0].mxu0
  %v760 = vadd.f32 %v156, %v759
  %v761 = vpop.f32.mrb[0].mxu0
  %v762 = vpop.f32.mrb[0].mxu0
  %v763 = vadd.f32 %v156, %v762
  %v764 = vpop.f32.mrb[0].mxu0
  %765 = vmatprep.mubr.bf16.mxu0 %v415
  %766 = vmatmul.mubr.bf16.gmra.mrb[0].mxu0 %v414
  %v767 = vpop.f32.mrb[0].mxu0
  %v768 = vadd.f32 %v156, %v767
  %v769 = vpop.f32.mrb[0].mxu0
  %v770 = vpop.f32.mrb[0].mxu0
  %v771 = vadd.f32 %v156, %v770
  %v772 = vpop.f32.mrb[0].mxu0
  %773 = vmatprep.mubr.bf16.mxu0 %v418
  %774 = vmatmul.mubr.bf16.gmra.mrb[0].mxu0 %v417
  %v775 = vpop.f32.mrb[0].mxu0
  %v776 = vadd.f32 %v156, %v775
  %v777 = vpop.f32.mrb[0].mxu0
  %v778 = vpop.f32.mrb[0].mxu0
  %v779 = vadd.f32 %v156, %v778
  %v780 = vpop.f32.mrb[0].mxu0
  %781 = vmatprep.mubr.bf16.mxu0 %v421
  %782 = vmatmul.mubr.bf16.gmra.mrb[0].mxu0 %v420
  %v783 = vpop.f32.mrb[0].mxu0
  %v784 = vadd.f32 %v156, %v783
  %v785 = vpop.f32.mrb[0].mxu0
  %v786 = vpop.f32.mrb[0].mxu0
  %v787 = vadd.f32 %v156, %v786
  %v788 = vpop.f32.mrb[0].mxu0
  %789 = vmatprep.mubr.bf16.mxu0 %v424
  %790 = vmatmul.mubr.bf16.gmra.mrb[0].mxu0 %v423
  %v791 = vpop.f32.mrb[0].mxu0
  %v792 = vadd.f32 %v156, %v791
  %v793 = vpop.f32.mrb[0].mxu0
  %v794 = vpop.f32.mrb[0].mxu0
  %v795 = vadd.f32 %v156, %v794
  %v796 = vpop.f32.mrb[0].mxu0
  %797 = vmatprep.mubr.bf16.mxu0 %v427
  %798 = vmatmul.mubr.bf16.gmra.mrb[0].mxu0 %v426
  %v799 = vpop.f32.mrb[0].mxu0
  %v800 = vadd.f32 %v156, %v799
  %v801 = vpop.f32.mrb[0].mxu0
  %v802 = vpop.f32.mrb[0].mxu0
  %v803 = vadd.f32 %v156, %v802
  %v804 = vpop.f32.mrb[0].mxu0
  %805 = vmatprep.mubr.bf16.mxu0 %v430
  %806 = vmatmul.mubr.bf16.gmra.mrb[0].mxu0 %v429
  %v807 = vpop.f32.mrb[0].mxu0
  %v808 = vadd.f32 %v156, %v807
  %v809 = vpop.f32.mrb[0].mxu0
  %v810 = vpop.f32.mrb[0].mxu0
  %v811 = vadd.f32 %v156, %v810
  %v812 = vpop.f32.mrb[0].mxu0
  %813 = vmatprep.mubr.bf16.mxu0 %v433
  %814 = vmatmul.mubr.bf16.gmra.mrb[0].mxu0 %v432
  %v815 = vpop.f32.mrb[0].mxu0
  %v816 = vadd.f32 %v156, %v815
  %v817 = vpop.f32.mrb[0].mxu0
  %v818 = vpop.f32.mrb[0].mxu0
  %v819 = vadd.f32 %v156, %v818
  %v820 = vpop.f32.mrb[0].mxu0
  %821 = vmatprep.mubr.bf16.mxu0 %v436
  %822 = vmatmul.mubr.bf16.gmra.mrb[0].mxu0 %v435
  %v823 = vpop.f32.mrb[0].mxu0
  %v824 = vadd.f32 %v156, %v823
  %v825 = vpop.f32.mrb[0].mxu0
  %v826 = vpop.f32.mrb[0].mxu0
  %v827 = vadd.f32 %v156, %v826
  %v828 = vpop.f32.mrb[0].mxu0
  %829 = vmatprep.mubr.bf16.mxu0 %v439
  %830 = vmatmul.mubr.bf16.gmra.mrb[0].mxu0 %v438
  %v831 = vpop.f32.mrb[0].mxu0
  %v832 = vadd.f32 %v156, %v831
  %v833 = vpop.f32.mrb[0].mxu0
  %v834 = vpop.f32.mrb[0].mxu0
  %v835 = vadd.f32 %v156, %v834
  %v836 = vpop.f32.mrb[0].mxu0
  %837 = vmatprep.mubr.bf16.mxu0 %v442
  %838 = vmatmul.mubr.bf16.gmra.mrb[0].mxu0 %v441
  %v839 = vpop.f32.mrb[0].mxu0
  %v840 = vadd.f32 %v156, %v839
  %v841 = vpop.f32.mrb[0].mxu0
  %v842 = vpop.f32.mrb[0].mxu0
  %v843 = vadd.f32 %v156, %v842
  %v844 = vpop.f32.mrb[0].mxu0
  %845 = vmatprep.mubr.bf16.mxu0 %v445
  %846 = vmatmul.mubr.bf16.gmra.mrb[0].mxu0 %v444
  %v847 = vpop.f32.mrb[0].mxu0
  %v848 = vadd.f32 %v156, %v847
  %v849 = vpop.f32.mrb[0].mxu0
  %v850 = vpop.f32.mrb[0].mxu0
  %v851 = vadd.f32 %v156, %v850
  %v852 = vpop.f32.mrb[0].mxu0
  %853 = vmatprep.mubr.bf16.mxu0 %v448
  %854 = vmatmul.mubr.bf16.gmra.mrb[0].mxu0 %v447
  %v855 = vpop.f32.mrb[0].mxu0
  %v856 = vadd.f32 %v156, %v855
  %v857 = vpop.f32.mrb[0].mxu0
  %v858 = vpop.f32.mrb[0].mxu0
  %v859 = vadd.f32 %v156, %v858
  %v860 = vpop.f32.mrb[0].mxu0
  %861 = vmatprep.mubr.bf16.mxu0 %v451
  %862 = vmatmul.mubr.bf16.gmra.mrb[0].mxu0 %v450
  %v863 = vpop.f32.mrb[0].mxu0
  %v864 = vadd.f32 %v156, %v863
  %v865 = vpop.f32.mrb[0].mxu0
  %v866 = vpop.f32.mrb[0].mxu0
  %v867 = vadd.f32 %v156, %v866
  %v868 = vpop.f32.mrb[0].mxu0
  %869 = vmatprep.mubr.bf16.mxu0 %v454
  %870 = vmatmul.mubr.bf16.gmra.mrb[0].mxu0 %v453
  %v871 = vpop.f32.mrb[0].mxu0
  %v872 = vadd.f32 %v156, %v871
  %v873 = vpop.f32.mrb[0].mxu0
  %v874 = vpop.f32.mrb[0].mxu0
  %v875 = vadd.f32 %v156, %v874
  %v876 = vpop.f32.mrb[0].mxu0
  %877 = vmatprep.mubr.bf16.mxu0 %v457
  %878 = vmatmul.mubr.bf16.gmra.mrb[0].mxu0 %v456
  %v879 = vpop.f32.mrb[0].mxu0
  %v880 = vadd.f32 %v156, %v879
  %v881 = vpop.f32.mrb[0].mxu0
  %v882 = vpop.f32.mrb[0].mxu0
  %v883 = vadd.f32 %v156, %v882
  %v884 = vpop.f32.mrb[0].mxu0
  %885 = vmatprep.mubr.bf16.mxu0 %v460
  %886 = vmatmul.mubr.bf16.gmra.mrb[0].mxu0 %v459
  %v887 = vpop.f32.mrb[0].mxu0
  %v888 = vadd.f32 %v156, %v887
  %v889 = vpop.f32.mrb[0].mxu0
  %v890 = vpop.f32.mrb[0].mxu0
  %v891 = vadd.f32 %v156, %v890
  %v892 = vpop.f32.mrb[0].mxu0
  %893 = vmatprep.mubr.bf16.mxu0 %v463
  %894 = vmatmul.mubr.bf16.gmra.mrb[0].mxu0 %v462
  %v895 = vpop.f32.mrb[0].mxu0
  %v896 = vadd.f32 %v156, %v895
  %v897 = vpop.f32.mrb[0].mxu0
  %v898 = vpop.f32.mrb[0].mxu0
  %v899 = vadd.f32 %v156, %v898
  %v900 = vpop.f32.mrb[0].mxu0
  %901 = vmatprep.mubr.bf16.mxu0 %v466
  %902 = vmatmul.mubr.bf16.gmra.mrb[0].mxu0 %v465
  %v903 = vpop.f32.mrb[0].mxu0
  %v904 = vadd.f32 %v156, %v903
  %v905 = vpop.f32.mrb[0].mxu0
  %v906 = vpop.f32.mrb[0].mxu0
  %v907 = vadd.f32 %v156, %v906
  %v908 = vpop.f32.mrb[0].mxu0
  %909 = vmatprep.mubr.bf16.mxu0 %v469
  %910 = vmatmul.mubr.bf16.gmra.mrb[0].mxu0 %v468
  %v911 = vpop.f32.mrb[0].mxu0
  %v912 = vadd.f32 %v156, %v911
  %v913 = vpop.f32.mrb[0].mxu0
  %v914 = vpop.f32.mrb[0].mxu0
  %v915 = vadd.f32 %v156, %v914
  %v916 = vpop.f32.mrb[0].mxu0
  %917 = vmatprep.mubr.bf16.mxu0 %v472
  %918 = vmatmul.mubr.bf16.gmra.mrb[0].mxu0 %v471
  %v919 = vpop.f32.mrb[0].mxu0
  %v920 = vadd.f32 %v156, %v919
  %v921 = vpop.f32.mrb[0].mxu0
  %v922 = vpop.f32.mrb[0].mxu0
  %v923 = vadd.f32 %v156, %v922
  %v924 = vpop.f32.mrb[0].mxu0
  %925 = vmatprep.mubr.bf16.mxu0 %v475
  %926 = vmatmul.mubr.bf16.gmra.mrb[0].mxu0 %v474
  %v927 = vpop.f32.mrb[0].mxu0
  %v928 = vadd.f32 %v156, %v927
  %v929 = vpop.f32.mrb[0].mxu0
  %v930 = vpop.f32.mrb[0].mxu0
  %v931 = vadd.f32 %v156, %v930
  %v932 = vpop.f32.mrb[0].mxu0
  %933 = vmatprep.mubr.bf16.mxu0 %v478
  %934 = vmatmul.mubr.bf16.gmra.mrb[0].mxu0 %v477
  %v935 = vpop.f32.mrb[0].mxu0
  %v936 = vadd.f32 %v156, %v935
  %v937 = vpop.f32.mrb[0].mxu0
  %v938 = vpop.f32.mrb[0].mxu0
  %v939 = vadd.f32 %v156, %v938
  %v940 = vpop.f32.mrb[0].mxu0
  %941 = vmatprep.mubr.bf16.mxu0 %v481
  %942 = vmatmul.mubr.bf16.gmra.mrb[0].mxu0 %v480
  %v943 = vpop.f32.mrb[0].mxu0
  %v944 = vadd.f32 %v156, %v943
  %v945 = vpop.f32.mrb[0].mxu0
  %v946 = vpop.f32.mrb[0].mxu0
  %v947 = vadd.f32 %v156, %v946
  %v948 = vpop.f32.mrb[0].mxu0
  %949 = vdwg.mxu0
  %950 = vmatprep.subr.bf16.mxu0 0
  %951 = vmatpush1.bf16.msra.mxu0 %v621
  %952 = vmatprep.subr.bf16.mxu0 0
  %953 = vmatpush1.bf16.msra.mxu0 %v622
  %954 = vmatprep.subr.bf16.mxu0 0
  %955 = vmatpush1.bf16.msra.mxu0 0
  %956 = vmatprep.subr.bf16.mxu0 0
  %957 = vmatpush1.bf16.msra.mxu0 0
  %958 = vmatprep.subr.bf16.mxu0 0
  %959 = vmatpush1.bf16.msra.mxu0 0
  %960 = vmatprep.subr.bf16.mxu0 0
  %961 = vmatpush1.bf16.msra.mxu0 0
  %962 = vmatprep.subr.bf16.mxu0 0
  %963 = vmatpush1.bf16.msra.mxu0 0
  %964 = vmatprep.subr.bf16.mxu0 0
  %965 = vmatpush1.bf16.msra.mxu0 0
  %966 = vmatprep.subr.bf16.mxu0 0
  %967 = vmatpush1.bf16.msra.mxu0 0
  %968 = vmatprep.subr.bf16.mxu0 0
  %969 = vmatpush1.bf16.msra.mxu0 0
  %970 = vmatprep.subr.bf16.mxu0 0
  %971 = vmatpush1.bf16.msra.mxu0 0
  %972 = vmatprep.subr.bf16.mxu0 0
  %973 = vmatpush1.bf16.msra.mxu0 0
  %974 = vmatprep.subr.bf16.mxu0 0
  %975 = vmatpush1.bf16.msra.mxu0 0
  %976 = vmatprep.subr.bf16.mxu0 0
  %977 = vmatpush1.bf16.msra.mxu0 0
  %978 = vmatprep.subr.bf16.mxu0 0
  %979 = vmatpush1.bf16.msra.mxu0 0
  %980 = vmatprep.subr.bf16.mxu0 0
  %981 = vmatpush1.bf16.msra.mxu0 0
  %982 = vmatprep.mubr.bf16.mxu0 0
  %983 = vmatmul.mubr.bf16.gmra.mrb[0].mxu0 %v643
  %v984 = vpop.f32.mrb[0].mxu0
  %v985 = vadd.f32 %v752, %v984
  %v986 = vpop.f32.mrb[0].mxu0
  %v987 = vpop.f32.mrb[0].mxu0
  %v988 = vadd.f32 %v755, %v987
  %v989 = vpop.f32.mrb[0].mxu0
  %990 = vmatprep.mubr.bf16.mxu0 0
  %991 = vmatmul.mubr.bf16.gmra.mrb[0].mxu0 %v646
  %v992 = vpop.f32.mrb[0].mxu0
  %v993 = vadd.f32 %v760, %v992
  %v994 = vpop.f32.mrb[0].mxu0
  %v995 = vpop.f32.mrb[0].mxu0
  %v996 = vadd.f32 %v763, %v995
  %v997 = vpop.f32.mrb[0].mxu0
  %998 = vmatprep.mubr.bf16.mxu0 0
  %999 = vmatmul.mubr.bf16.gmra.mrb[0].mxu0 %v649
  %v1000 = vpop.f32.mrb[0].mxu0
  %v1001 = vadd.f32 %v768, %v1000
  %v1002 = vpop.f32.mrb[0].mxu0
  %v1003 = vpop.f32.mrb[0].mxu0
  %v1004 = vadd.f32 %v771, %v1003
  %v1005 = vpop.f32.mrb[0].mxu0
  %1006 = vmatprep.mubr.bf16.mxu0 0
  %1007 = vmatmul.mubr.bf16.gmra.mrb[0].mxu0 %v652
  %v1008 = vpop.f32.mrb[0].mxu0
  %v1009 = vadd.f32 %v776, %v1008
  %v1010 = vpop.f32.mrb[0].mxu0
  %v1011 = vpop.f32.mrb[0].mxu0
  %v1012 = vadd.f32 %v779, %v1011
  %v1013 = vpop.f32.mrb[0].mxu0
  %1014 = vmatprep.mubr.bf16.mxu0 0
  %1015 = vmatmul.mubr.bf16.gmra.mrb[0].mxu0 %v655
  %v1016 = vpop.f32.mrb[0].mxu0
  %v1017 = vadd.f32 %v784, %v1016
  %v1018 = vpop.f32.mrb[0].mxu0
  %v1019 = vpop.f32.mrb[0].mxu0
  %v1020 = vadd.f32 %v787, %v1019
  %v1021 = vpop.f32.mrb[0].mxu0
  %1022 = vmatprep.mubr.bf16.mxu0 0
  %1023 = vmatmul.mubr.bf16.gmra.mrb[0].mxu0 %v658
  %v1024 = vpop.f32.mrb[0].mxu0
  %v1025 = vadd.f32 %v792, %v1024
  %v1026 = vpop.f32.mrb[0].mxu0
  %v1027 = vpop.f32.mrb[0].mxu0
  %v1028 = vadd.f32 %v795, %v1027
  %v1029 = vpop.f32.mrb[0].mxu0
  %1030 = vmatprep.mubr.bf16.mxu0 0
  %1031 = vmatmul.mubr.bf16.gmra.mrb[0].mxu0 %v661
  %v1032 = vpop.f32.mrb[0].mxu0
  %v1033 = vadd.f32 %v800, %v1032
  %v1034 = vpop.f32.mrb[0].mxu0
  %v1035 = vpop.f32.mrb[0].mxu0
  %v1036 = vadd.f32 %v803, %v1035
  %v1037 = vpop.f32.mrb[0].mxu0
  %1038 = vmatprep.mubr.bf16.mxu0 0
  %1039 = vmatmul.mubr.bf16.gmra.mrb[0].mxu0 %v664
  %v1040 = vpop.f32.mrb[0].mxu0
  %v1041 = vadd.f32 %v808, %v1040
  %v1042 = vpop.f32.mrb[0].mxu0
  %v1043 = vpop.f32.mrb[0].mxu0
  %v1044 = vadd.f32 %v811, %v1043
  %v1045 = vpop.f32.mrb[0].mxu0
  %1046 = vmatprep.mubr.bf16.mxu0 0
  %1047 = vmatmul.mubr.bf16.gmra.mrb[0].mxu0 %v667
  %v1048 = vpop.f32.mrb[0].mxu0
  %v1049 = vadd.f32 %v816, %v1048
  %v1050 = vpop.f32.mrb[0].mxu0
  %v1051 = vpop.f32.mrb[0].mxu0
  %v1052 = vadd.f32 %v819, %v1051
  %v1053 = vpop.f32.mrb[0].mxu0
  %1054 = vmatprep.mubr.bf16.mxu0 0
  %1055 = vmatmul.mubr.bf16.gmra.mrb[0].mxu0 %v670
  %v1056 = vpop.f32.mrb[0].mxu0
  %v1057 = vadd.f32 %v824, %v1056
  %v1058 = vpop.f32.mrb[0].mxu0
  %v1059 = vpop.f32.mrb[0].mxu0
  %v1060 = vadd.f32 %v827, %v1059
  %v1061 = vpop.f32.mrb[0].mxu0
  %1062 = vmatprep.mubr.bf16.mxu0 0
  %1063 = vmatmul.mubr.bf16.gmra.mrb[0].mxu0 %v673
  %v1064 = vpop.f32.mrb[0].mxu0
  %v1065 = vadd.f32 %v832, %v1064
  %v1066 = vpop.f32.mrb[0].mxu0
  %v1067 = vpop.f32.mrb[0].mxu0
  %v1068 = vadd.f32 %v835, %v1067
  %v1069 = vpop.f32.mrb[0].mxu0
  %1070 = vmatprep.mubr.bf16.mxu0 0
  %1071 = vmatmul.mubr.bf16.gmra.mrb[0].mxu0 %v676
  %v1072 = vpop.f32.mrb[0].mxu0
  %v1073 = vadd.f32 %v840, %v1072
  %v1074 = vpop.f32.mrb[0].mxu0
  %v1075 = vpop.f32.mrb[0].mxu0
  %v1076 = vadd.f32 %v843, %v1075
  %v1077 = vpop.f32.mrb[0].mxu0
  %1078 = vmatprep.mubr.bf16.mxu0 0
  %1079 = vmatmul.mubr.bf16.gmra.mrb[0].mxu0 %v679
  %v1080 = vpop.f32.mrb[0].mxu0
  %v1081 = vadd.f32 %v848, %v1080
  %v1082 = vpop.f32.mrb[0].mxu0
  %v1083 = vpop.f32.mrb[0].mxu0
  %v1084 = vadd.f32 %v851, %v1083
  %v1085 = vpop.f32.mrb[0].mxu0
  %1086 = vmatprep.mubr.bf16.mxu0 0
  %1087 = vmatmul.mubr.bf16.gmra.mrb[0].mxu0 %v682
  %v1088 = vpop.f32.mrb[0].mxu0
  %v1089 = vadd.f32 %v856, %v1088
  %v1090 = vpop.f32.mrb[0].mxu0
  %v1091 = vpop.f32.mrb[0].mxu0
  %v1092 = vadd.f32 %v859, %v1091
  %v1093 = vpop.f32.mrb[0].mxu0
  %1094 = vmatprep.mubr.bf16.mxu0 0
  %1095 = vmatmul.mubr.bf16.gmra.mrb[0].mxu0 %v685
  %v1096 = vpop.f32.mrb[0].mxu0
  %v1097 = vadd.f32 %v864, %v1096
  %v1098 = vpop.f32.mrb[0].mxu0
  %v1099 = vpop.f32.mrb[0].mxu0
  %v1100 = vadd.f32 %v867, %v1099
  %v1101 = vpop.f32.mrb[0].mxu0
  %1102 = vmatprep.mubr.bf16.mxu0 0
  %1103 = vmatmul.mubr.bf16.gmra.mrb[0].mxu0 %v688
  %v1104 = vpop.f32.mrb[0].mxu0
  %v1105 = vadd.f32 %v872, %v1104
  %v1106 = vpop.f32.mrb[0].mxu0
  %v1107 = vpop.f32.mrb[0].mxu0
  %v1108 = vadd.f32 %v875, %v1107
  %v1109 = vpop.f32.mrb[0].mxu0
  %1110 = vmatprep.mubr.bf16.mxu0 0
  %1111 = vmatmul.mubr.bf16.gmra.mrb[0].mxu0 %v691
  %v1112 = vpop.f32.mrb[0].mxu0
  %v1113 = vadd.f32 %v880, %v1112
  %v1114 = vpop.f32.mrb[0].mxu0
  %v1115 = vpop.f32.mrb[0].mxu0
  %v1116 = vadd.f32 %v883, %v1115
  %v1117 = vpop.f32.mrb[0].mxu0
  %1118 = vmatprep.mubr.bf16.mxu0 0
  %1119 = vmatmul.mubr.bf16.gmra.mrb[0].mxu0 %v694
  %v1120 = vpop.f32.mrb[0].mxu0
  %v1121 = vadd.f32 %v888, %v1120
  %v1122 = vpop.f32.mrb[0].mxu0
  %v1123 = vpop.f32.mrb[0].mxu0
  %v1124 = vadd.f32 %v891, %v1123
  %v1125 = vpop.f32.mrb[0].mxu0
  %1126 = vmatprep.mubr.bf16.mxu0 0
  %1127 = vmatmul.mubr.bf16.gmra.mrb[0].mxu0 %v697
  %v1128 = vpop.f32.mrb[0].mxu0
  %v1129 = vadd.f32 %v896, %v1128
  %v1130 = vpop.f32.mrb[0].mxu0
  %v1131 = vpop.f32.mrb[0].mxu0
  %v1132 = vadd.f32 %v899, %v1131
  %v1133 = vpop.f32.mrb[0].mxu0
  %1134 = vmatprep.mubr.bf16.mxu0 0
  %1135 = vmatmul.mubr.bf16.gmra.mrb[0].mxu0 %v700
  %v1136 = vpop.f32.mrb[0].mxu0
  %v1137 = vadd.f32 %v904, %v1136
  %v1138 = vpop.f32.mrb[0].mxu0
  %v1139 = vpop.f32.mrb[0].mxu0
  %v1140 = vadd.f32 %v907, %v1139
  %v1141 = vpop.f32.mrb[0].mxu0
  %1142 = vmatprep.mubr.bf16.mxu0 0
  %1143 = vmatmul.mubr.bf16.gmra.mrb[0].mxu0 %v703
  %v1144 = vpop.f32.mrb[0].mxu0
  %v1145 = vadd.f32 %v912, %v1144
  %v1146 = vpop.f32.mrb[0].mxu0
  %v1147 = vpop.f32.mrb[0].mxu0
  %v1148 = vadd.f32 %v915, %v1147
  %v1149 = vpop.f32.mrb[0].mxu0
  %1150 = vmatprep.mubr.bf16.mxu0 0
  %1151 = vmatmul.mubr.bf16.gmra.mrb[0].mxu0 %v706
  %v1152 = vpop.f32.mrb[0].mxu0
  %v1153 = vadd.f32 %v920, %v1152
  %v1154 = vpop.f32.mrb[0].mxu0
  %v1155 = vpop.f32.mrb[0].mxu0
  %v1156 = vadd.f32 %v923, %v1155
  %v1157 = vpop.f32.mrb[0].mxu0
  %1158 = vmatprep.mubr.bf16.mxu0 0
  %1159 = vmatmul.mubr.bf16.gmra.mrb[0].mxu0 %v709
  %v1160 = vpop.f32.mrb[0].mxu0
  %v1161 = vadd.f32 %v928, %v1160
  %v1162 = vpop.f32.mrb[0].mxu0
  %v1163 = vpop.f32.mrb[0].mxu0
  %v1164 = vadd.f32 %v931, %v1163
  %v1165 = vpop.f32.mrb[0].mxu0
  %1166 = vmatprep.mubr.bf16.mxu0 0
  %1167 = vmatmul.mubr.bf16.gmra.mrb[0].mxu0 %v712
  %v1168 = vpop.f32.mrb[0].mxu0
  %v1169 = vadd.f32 %v936, %v1168
  %v1170 = vpop.f32.mrb[0].mxu0
  %v1171 = vpop.f32.mrb[0].mxu0
  %v1172 = vadd.f32 %v939, %v1171
  %v1173 = vpop.f32.mrb[0].mxu0
  %1174 = vmatprep.mubr.bf16.mxu0 0
  %1175 = vmatmul.mubr.bf16.gmra.mrb[0].mxu0 %v715
  %v1176 = vpop.f32.mrb[0].mxu0
  %v1177 = vadd.f32 %v944, %v1176
  %v1178 = vpop.f32.mrb[0].mxu0
  %v1179 = vpop.f32.mrb[0].mxu0
  %v1180 = vadd.f32 %v947, %v1179
  %v1181 = vpop.f32.mrb[0].mxu0
  %1182 = vdwg.mxu0
  %1183 = vst.msk [vmem:[%s3] sm:$0xff] %vm641, %v985
  %1184 = vst.msk [vmem:[%s3 + $0x8] sm:$0xff] %vm641, %v988
  %1185 = vst.msk [vmem:[%s3 + $0x10] sm:$0xff] %vm641, %v993
  %1186 = vst.msk [vmem:[%s3 + $0x18] sm:$0xff] %vm641, %v996
  %1187 = vst.msk [vmem:[%s3 + $0x20] sm:$0xff] %vm641, %v1001
  %1188 = vst.msk [vmem:[%s3 + $0x28] sm:$0xff] %vm641, %v1004
  %1189 = vst.msk [vmem:[%s3 + $0x30] sm:$0xff] %vm641, %v1009
  %1190 = vst.msk [vmem:[%s3 + $0x38] sm:$0xff] %vm641, %v1012
  %1191 = vst.msk [vmem:[%s3 + $0x40] sm:$0xff] %vm641, %v1017
  %1192 = vst.msk [vmem:[%s3 + $0x48] sm:$0xff] %vm641, %v1020
  %1193 = vst.msk [vmem:[%s3 + $0x50] sm:$0xff] %vm641, %v1025
  %1194 = vst.msk [vmem:[%s3 + $0x58] sm:$0xff] %vm641, %v1028
  %1195 = vst.msk [vmem:[%s3 + $0x60] sm:$0xff] %vm641, %v1033
  %1196 = vst.msk [vmem:[%s3 + $0x68] sm:$0xff] %vm641, %v1036
  %1197 = vst.msk [vmem:[%s3 + $0x70] sm:$0xff] %vm641, %v1041
  %1198 = vst.msk [vmem:[%s3 + $0x78] sm:$0xff] %vm641, %v1044
  %1199 = vst.msk [vmem:[%s3 + $0x80] sm:$0xff] %vm641, %v1049
  %1200 = vst.msk [vmem:[%s3 + $0x88] sm:$0xff] %vm641, %v1052
  %1201 = vst.msk [vmem:[%s3 + $0x90] sm:$0xff] %vm641, %v1057
  %1202 = vst.msk [vmem:[%s3 + $0x98] sm:$0xff] %vm641, %v1060
  %1203 = vst.msk [vmem:[%s3 + $0xa0] sm:$0xff] %vm641, %v1065
  %1204 = vst.msk [vmem:[%s3 + $0xa8] sm:$0xff] %vm641, %v1068
  %1205 = vst.msk [vmem:[%s3 + $0xb0] sm:$0xff] %vm641, %v1073
  %1206 = vst.msk [vmem:[%s3 + $0xb8] sm:$0xff] %vm641, %v1076
  %1207 = vst.msk [vmem:[%s3 + $0xc0] sm:$0xff] %vm641, %v1081
  %1208 = vst.msk [vmem:[%s3 + $0xc8] sm:$0xff] %vm641, %v1084
  %1209 = vst.msk [vmem:[%s3 + $0xd0] sm:$0xff] %vm641, %v1089
  %1210 = vst.msk [vmem:[%s3 + $0xd8] sm:$0xff] %vm641, %v1092
  %1211 = vst.msk [vmem:[%s3 + $0xe0] sm:$0xff] %vm641, %v1097
  %1212 = vst.msk [vmem:[%s3 + $0xe8] sm:$0xff] %vm641, %v1100
  %1213 = vst.msk [vmem:[%s3 + $0xf0] sm:$0xff] %vm641, %v1105
  %1214 = vst.msk [vmem:[%s3 + $0xf8] sm:$0xff] %vm641, %v1108
  %1215 = vst.msk [vmem:[%s3 + $0x100] sm:$0xff] %vm641, %v1113
  %1216 = vst.msk [vmem:[%s3 + $0x108] sm:$0xff] %vm641, %v1116
  %1217 = vst.msk [vmem:[%s3 + $0x110] sm:$0xff] %vm641, %v1121
  %1218 = vst.msk [vmem:[%s3 + $0x118] sm:$0xff] %vm641, %v1124
  %1219 = vst.msk [vmem:[%s3 + $0x120] sm:$0xff] %vm641, %v1129
  %1220 = vst.msk [vmem:[%s3 + $0x128] sm:$0xff] %vm641, %v1132
  %1221 = vst.msk [vmem:[%s3 + $0x130] sm:$0xff] %vm641, %v1137
  %1222 = vst.msk [vmem:[%s3 + $0x138] sm:$0xff] %vm641, %v1140
  %1223 = vst.msk [vmem:[%s3 + $0x140] sm:$0xff] %vm641, %v1145
  %1224 = vst.msk [vmem:[%s3 + $0x148] sm:$0xff] %vm641, %v1148
  %1225 = vst.msk [vmem:[%s3 + $0x150] sm:$0xff] %vm641, %v1153
  %1226 = vst.msk [vmem:[%s3 + $0x158] sm:$0xff] %vm641, %v1156
  %1227 = vst.msk [vmem:[%s3 + $0x160] sm:$0xff] %vm641, %v1161
  %1228 = vst.msk [vmem:[%s3 + $0x168] sm:$0xff] %vm641, %v1164
  %1229 = vst.msk [vmem:[%s3 + $0x170] sm:$0xff] %vm641, %v1169
  %1230 = vst.msk [vmem:[%s3 + $0x178] sm:$0xff] %vm641, %v1172
  %1231 = vst.msk [vmem:[%s3 + $0x180] sm:$0xff] %vm641, %v1177
  %1232 = vst.msk [vmem:[%s3 + $0x188] sm:$0xff] %vm641, %v1180
  // Predicated region
  $region14: #{conv_mixer_pallas.1} parent=0 // pred_check
    _
  $region15: #{conv_mixer_pallas.1} parent=0 // pred_check_branch
    %1234 = sbr.rel (0) target = $region17
  $region16: #{conv_mixer_pallas.1} parent=0 // pred_region
    _
  $region17: #{conv_mixer_pallas.1} parent=0 // pred_fallthru
    _
  // Predicated region
  $region18: #{conv_mixer_pallas.1} parent=0 // pred_check
    _
  $region19: #{conv_mixer_pallas.1} parent=0 // pred_check_branch
    %1236 = sbr.rel (0) target = $region21
  $region20: #{conv_mixer_pallas.1} parent=0 // pred_region
    _
  $region21: #{conv_mixer_pallas.1} parent=0 // pred_fallthru
    _

</llo_original>
